<compile_context>
chip_gen: v7x
topology: tpu7x:2x2x1
jax: 0.10.0
libtpu: 0.0.40
codegen_flags: <defaults>
</compile_context>

<pallas_src>
import math
import functools

import jax
import jax.numpy as jnp
from jax.experimental import pallas as pl
from jax.experimental.pallas import tpu as pltpu


# ---------------------------------------------------------------------------
# Kernel
# ---------------------------------------------------------------------------
def _pos_enc_dropout_kernel(x_ref, pe_ref, mask_ref, o_ref, *, scale):
    x = x_ref[...]
    y = x + pe_ref[...].astype(x.dtype)                 # bf16 pe -> f32 add
    # mask holds exact {0.0, 1.0}; scale = 1/(1-p) applied as an f32 constant
    o_ref[...] = y * (mask_ref[...].astype(x.dtype) * scale)


# ---------------------------------------------------------------------------
# Parameter / buffer setup (mirrors torch __init__), stored in bfloat16
# ---------------------------------------------------------------------------
def make_positional_encoding(d_model, max_len=5000, dtype=jnp.bfloat16):
    position = jnp.arange(0, max_len, dtype=jnp.float32)[:, None]        # (L, 1)
    div_term = jnp.exp(
        jnp.arange(0, d_model, 2, dtype=jnp.float32)
        * (-math.log(10000.0) / d_model)
    )                                                                     # (ceil(D/2),)
    ang = position * div_term                                             # (L, ceil(D/2))
    pe = jnp.zeros((max_len, d_model), dtype=jnp.float32)
    pe = pe.at[:, 0::2].set(jnp.sin(ang))
    pe = pe.at[:, 1::2].set(jnp.cos(ang)[:, : d_model // 2])              # odd-D safe
    return pe.astype(dtype)                                               # (L, D) bf16


# ---------------------------------------------------------------------------
# Forward wrapper
# ---------------------------------------------------------------------------
_TARGET_TILE_BYTES = 2 * 1024 * 1024  # ~2 MiB per f32 input tile


def positional_encoding_forward(x, pe, key, *, p=0.1, training=True):
    """x: (S, D) float32; pe: (max_len, D) buffer (bf16 or f32); key: PRNG key."""
    S, D = x.shape
    pe_slice = pe[:S, :]

    # Eval / no-dropout: a single fused add that XLA already emits at roofline;
    # skip the pallas_call launch + pipeline overhead entirely.
    if (not training) or p == 0.0:
        return x + pe_slice.astype(x.dtype)
    if p >= 1.0:
        return jnp.zeros_like(x)

    scale = 1.0 / (1.0 - p)
    keep = jax.random.bernoulli(key, 1.0 - p, shape=(S, D)).astype(jnp.bfloat16)

    # ---- choose a lane-dense 2-D working layout --------------------------
    total = S * D
    if D % 128 == 0:
        rows, cols, flat = S, D, False
    elif total % 128 == 0:
        rows, cols, flat = total // 128, 128, True     # free reshape (elementwise op)
    else:
        rows, cols, flat = S, D, False                 # ragged fallback: one full block

    if flat:
        x2d = x.reshape(rows, cols)
        pe2d = pe_slice.reshape(rows, cols)
        m2d = keep.reshape(rows, cols)
    else:
        x2d, pe2d, m2d = x, pe_slice, keep

    # ---- tile rows: biggest tile ~2 MiB of f32, aligned for packed dtypes --
    if cols % 128 == 0 and rows > 8:
        block_rows = max(8, min(rows, _TARGET_TILE_BYTES // (cols * 4)))
        if block_rows < rows:
            block_rows = max(32, (block_rows // 32) * 32)
    else:
        block_rows = rows                              # full-dim block (always legal)
    grid = (pl.cdiv(rows, block_rows),)

    # Explicit VMEM budget: x(4) + pe(2) + mask(2) + out(4) B/elem, double-buffered.
    tile_bytes = block_rows * cols * (4 + 2 + 2 + 4) * 2
    vmem_limit = int(min(100 * 1024 * 1024,
                         max(16 * 1024 * 1024, tile_bytes + 4 * 1024 * 1024)))

    spec = pl.BlockSpec((block_rows, cols), lambda i: (i, 0))
    kernel = functools.partial(_pos_enc_dropout_kernel, scale=scale)

    out2d = pl.pallas_call(
        kernel,
        out_shape=jax.ShapeDtypeStruct((rows, cols), x.dtype),
        grid=grid,
        in_specs=[spec, spec, spec],
        out_specs=spec,
        compiler_params=pltpu.CompilerParams(
            dimension_semantics=("parallel",),         # megacore-shard on v7x
            vmem_limit_bytes=vmem_limit,
        ),
    )(x2d, pe2d, m2d)

    return out2d.reshape(S, D) if flat else out2d


# ---------------------------------------------------------------------------
# Self-test
# ---------------------------------------------------------------------------
if __name__ == "__main__":
    d_model = 32
    seq_len = 8
    max_len = 5000
    p_drop = 0.1
    scale = 1.0 / (1.0 - p_drop)

    root = jax.random.PRNGKey(0)
    x_key, drop_key = jax.random.split(root)

    x = jax.random.normal(x_key, (seq_len, d_model), dtype=jnp.float32)
    pe = make_positional_encoding(d_model, max_len=max_len)              # bf16 buffer
    pe_f32 = pe[:seq_len, :].astype(jnp.float32)

    # --- training mode (dropout active, p=0.1): Pallas kernel path ---------
    out = positional_encoding_forward(x, pe, drop_key, p=p_drop, training=True)
    out = jax.block_until_ready(out)
    assert out.shape == (seq_len, d_model)

    # reference with the identical (deterministic) keep-mask and bf16 pe
    keep = jax.random.bernoulli(drop_key, 1.0 - p_drop, (seq_len, d_model))
    ref = jnp.where(keep, (x + pe_f32) * scale, 0.0)
    assert jnp.allclose(out, ref, atol=1e-5, rtol=1e-5), "training-mode mismatch"

    # --- eval mode: identity dropout, plain XLA fused add ------------------
    out_eval = positional_encoding_forward(x, pe, drop_key, p=p_drop, training=False)
    out_eval = jax.block_until_ready(out_eval)
    assert jnp.allclose(out_eval, x + pe_f32, atol=1e-6), "eval-mode mismatch"

    # --- second shape exercising the lane-aligned (D % 128 == 0) path ------
    x2 = jax.random.normal(x_key, (16, 128), dtype=jnp.float32)
    pe2 = make_positional_encoding(128, max_len=64)
    out2 = jax.block_until_ready(
        positional_encoding_forward(x2, pe2, drop_key, p=p_drop, training=True))
    keep2 = jax.random.bernoulli(drop_key, 1.0 - p_drop, (16, 128))
    ref2 = jnp.where(keep2, (x2 + pe2[:16].astype(jnp.float32)) * scale, 0.0)
    assert jnp.allclose(out2, ref2, atol=1e-5, rtol=1e-5), "lane-aligned path mismatch"

    print("KERNEL_OK")
</pallas_src>

<mosaic_0001>
module attributes {stable_mosaic.version = 11 : i64} {
  func.func @_pos_enc_dropout_kernel(%arg0: i32, %arg1: memref<2x128xf32, #tpu.memory_space<vmem>>, %arg2: memref<2x128xbf16, #tpu.memory_space<vmem>>, %arg3: memref<2x128xbf16, #tpu.memory_space<vmem>>, %arg4: memref<2x128xf32, #tpu.memory_space<vmem>>) attributes {dimension_semantics = [#tpu.dimension_semantics<parallel>], iteration_bounds = array<i64: 1>, scalar_prefetch = 0 : i64, scratch_operands = 0 : i64, tpu.core_type = #tpu.core_type<tc>, window_params = [{transform_indices = @transform_0, window_bounds = array<i64: 2, 128>}, {transform_indices = @transform_1, window_bounds = array<i64: 2, 128>}, {transform_indices = @transform_2, window_bounds = array<i64: 2, 128>}, {transform_indices = @transform_3, window_bounds = array<i64: 2, 128>}]} {
    %c0 = arith.constant 0 : index
    %c0_0 = arith.constant 0 : index
    %0 = vector.load %arg1[%c0, %c0_0] : memref<2x128xf32, #tpu.memory_space<vmem>>, vector<2x128xf32>
    %c0_1 = arith.constant 0 : index
    %c0_2 = arith.constant 0 : index
    %1 = vector.load %arg2[%c0_1, %c0_2] : memref<2x128xbf16, #tpu.memory_space<vmem>>, vector<2x128xbf16>
    %2 = arith.extf %1 : vector<2x128xbf16> to vector<2x128xf32>
    %3 = arith.addf %0, %2 : vector<2x128xf32>
    %c0_3 = arith.constant 0 : index
    %c0_4 = arith.constant 0 : index
    %4 = vector.load %arg3[%c0_3, %c0_4] : memref<2x128xbf16, #tpu.memory_space<vmem>>, vector<2x128xbf16>
    %5 = arith.extf %4 : vector<2x128xbf16> to vector<2x128xf32>
    %cst = arith.constant 1.11111116 : f32
    %6 = vector.broadcast %cst : f32 to vector<2x128xf32>
    %7 = arith.mulf %5, %6 : vector<2x128xf32>
    %8 = arith.mulf %3, %7 : vector<2x128xf32>
    %c0_5 = arith.constant 0 : index
    %c0_6 = arith.constant 0 : index
    %9 = vector.load %arg4[%c0_5, %c0_6] : memref<2x128xf32, #tpu.memory_space<vmem>>, vector<2x128xf32>
    tpu.vector_store %arg4[%c0_5, %c0_6], %8 {strides = array<i32>} : memref<2x128xf32, #tpu.memory_space<vmem>>, vector<2x128xf32>,
    return
  }
  func.func @transform_0(%arg0: i32) -> (i32, i32) {
    %c0_i32 = arith.constant 0 : i32
    %c0_i32_0 = arith.constant 0 : i32
    return %arg0, %c0_i32 : i32, i32
  }
  func.func @transform_1(%arg0: i32) -> (i32, i32) {
    %c0_i32 = arith.constant 0 : i32
    %c0_i32_0 = arith.constant 0 : i32
    return %arg0, %c0_i32 : i32, i32
  }
  func.func @transform_2(%arg0: i32) -> (i32, i32) {
    %c0_i32 = arith.constant 0 : i32
    %c0_i32_0 = arith.constant 0 : i32
    return %arg0, %c0_i32 : i32, i32
  }
  func.func @transform_3(%arg0: i32) -> (i32, i32) {
    %c0_i32 = arith.constant 0 : i32
    %c0_i32_0 = arith.constant 0 : i32
    return %arg0, %c0_i32 : i32, i32
  }
}

</mosaic_0001>

<llo_original>
// kernel: tpu_custom_call.1
$region0: #{tpu_custom_call.1}
  #allocation0 [shape = 'u32[]', space=smem, size = 0x4, offset = 0x4, fixed_abs, tag = 'smem constant byte address 0x4 - core index']
  #allocation1 [shape = 'u32[144,128]{1,0:T(1,128)}', space=vmem, size = 0x12000, scoped, tag = 'internal scratch']
  %s0 = inlined_call_operand.hbm [shape: f32[2,128], index: 0, kind: input, shape index: {}]
  %s1 = inlined_call_operand.vmem [shape: bf16[2,128], index: 1, kind: input, shape index: {}]
  %s2 = inlined_call_operand.vmem [shape: bf16[2,128], index: 2, kind: input, shape index: {}]
  %s3 = inlined_call_operand.hbm [shape: f32[2,128], index: 3, kind: output, shape index: {}]
  %s4 = sld [smem:[#allocation0]]
  $region26: #{tpu_custom_call.1} parent=0
    _
  %s6 = ssub.s32 1, %s4
  %s7 = scalar_select 0, %s6, %s4
  $region1: #{tpu_custom_call.1} parent=0
    #allocation2 [shape = 'u8[1024]{0}', space=vmem, size = 0x400, scoped, tag = 'input window, operand 0, single buffered']
    #allocation3 [shape = 's32[1]{0}', space=sflag, size = 0x4, scoped, tag = 'scoped memory for tpu_custom_call.1']
    #allocation4 [shape = 's32[1]{0}', space=sflag, size = 0x4, scoped, tag = 'scoped memory for tpu_custom_call.1']
    #allocation5 [shape = 'u8[1024]{0}', space=vmem, size = 0x400, scoped, tag = 'output window, operand 0, single buffered']
    %8 = vsyncpa [#allocation3], 0
    %9 = vsyncpa [#allocation4], 0
    // Predicated region
    $region2: #{tpu_custom_call.1} parent=1 // pred_check
      _
    $region3: #{tpu_custom_call.1} parent=1 // pred_check_branch
      %11 = sbr.rel (0) target = $region5
    $region4: #{tpu_custom_call.1} parent=1 // pred_region
      %s13 = ssub.s32 32, 32
      %14 = vsyncadd [#allocation3], %s13
      %s16 = sshll.u32 [#allocation2], 4
      %s17 = int_to_ptr.vmem [resolvable:$true] %s16
      %19 = dma.hbm_to_vmem [thread:$0]  %s0, 32, %s17, [#allocation3]
    $region5: #{tpu_custom_call.1} parent=1 // pred_fallthru
      _
    // Predicated region
    $region6: #{tpu_custom_call.1} parent=1 // pred_check
      _
    $region7: #{tpu_custom_call.1} parent=1 // pred_check_branch
      %21 = sbr.rel (0) target = $region9
    $region8: #{tpu_custom_call.1} parent=1 // pred_region
      _
    $region9: #{tpu_custom_call.1} parent=1 // pred_fallthru
      _
    // Predicated region
    $region10: #{tpu_custom_call.1} parent=1 // pred_check
      _
    $region11: #{tpu_custom_call.1} parent=1 // pred_check_branch
      %23 = sbr.rel (0) target = $region13
    $region12: #{tpu_custom_call.1} parent=1 // pred_region
      _
    $region13: #{tpu_custom_call.1} parent=1 // pred_fallthru
      _
    // Predicated region
    $region14: #{tpu_custom_call.1} parent=1 // pred_check
      _
    $region15: #{tpu_custom_call.1} parent=1 // pred_check_branch
      %25 = sbr.rel (0) target = $region17
    $region16: #{tpu_custom_call.1} parent=1 // pred_region
      %26 = dma.done [#allocation3], 32
    $region17: #{tpu_custom_call.1} parent=1 // pred_fallthru
      _
    %v27 = vld [vmem:[#allocation2] sm:$0x3]
    %v28 = vld [vmem:[%s1] sm:$0x1]
    %v29 = vunpack.c.l.bf16 %v28
    %v30 = vadd.f32 %v27, %v29
    %v31 = vld [vmem:[%s2] sm:$0x1]
    %v32 = vunpack.c.l.bf16 %v31
    %v33 = vmul.f32 %v32, 1.1111112
    %v34 = vmul.f32 %v30, %v33
    %35 = vst [vmem:[#allocation5] sm:$0x3] %v34
    // Predicated region
    $region18: #{tpu_custom_call.1} parent=1 // pred_check
      _
    $region19: #{tpu_custom_call.1} parent=1 // pred_check_branch
      %37 = sbr.rel (0) target = $region21
    $region20: #{tpu_custom_call.1} parent=1 // pred_region
      %s39 = ssub.s32 32, 32
      %40 = vsyncadd [#allocation4], %s39
      %s42 = sshll.u32 [#allocation5], 4
      %s43 = int_to_ptr.vmem [resolvable:$true] %s42
      %45 = dma.vmem_to_hbm [thread:$0]  %s43, 32, %s3, [#allocation4]
    $region21: #{tpu_custom_call.1} parent=1 // pred_fallthru
      _
    // Predicated region
    $region22: #{tpu_custom_call.1} parent=1 // pred_check
      _
    $region23: #{tpu_custom_call.1} parent=1 // pred_check_branch
      %47 = sbr.rel (0) target = $region25
    $region24: #{tpu_custom_call.1} parent=1 // pred_region
      %48 = dma.done [#allocation4], 32
    $region25: #{tpu_custom_call.1} parent=1 // pred_fallthru
      _
    %49 = vsyncpa [#allocation3], 1
    %50 = vsyncpa [#allocation4], 1

</llo_original>
